<compile_context>
chip_gen: v7x
topology: tpu7x:2x2x1
jax: 0.10.0
libtpu: 0.0.40
codegen_flags: <defaults>
</compile_context>

<pallas_src>
from math import sqrt

import jax
import jax.numpy as jnp
from jax import lax
from jax.experimental import pallas as pl
from jax.experimental.pallas import tpu as pltpu


def _pick_row_tile(n, max_tile=512):
    """Largest row tile <= max_tile that divides n (or n itself if small)."""
    if n <= max_tile:
        return n
    for t in (512, 256, 128, 64, 32, 16, 8):
        if n % t == 0:
            return t
    return n


# ---------------------------------------------------------------------------
# Kernel 1: K / V projections (computed once, shared across the batch)
# ---------------------------------------------------------------------------
def _kv_proj_kernel(src_ref, val_ref, wk_ref, bk_ref, wv_ref, bv_ref,
                    k_ref, v_ref):
    # Operands fed to the MXU in their native dtype; f32 accumulation comes
    # from preferred_element_type (no pre-cast of the inputs).
    k = jnp.dot(src_ref[...], wk_ref[...], preferred_element_type=jnp.float32)
    v = jnp.dot(val_ref[...], wv_ref[...], preferred_element_type=jnp.float32)
    k_ref[...] = (k + bk_ref[...].astype(jnp.float32)).astype(k_ref.dtype)
    v_ref[...] = (v + bv_ref[...].astype(jnp.float32)).astype(v_ref.dtype)


def kv_projection(source, value, wk, bk, wv, bv):
    S, d_llm = source.shape
    HE = wk.shape[1]
    ts = _pick_row_tile(S)
    out_spec = pl.BlockSpec((ts, HE), lambda i: (i, 0))
    const2 = lambda i: (0, 0)
    return pl.pallas_call(
        _kv_proj_kernel,
        out_shape=(jax.ShapeDtypeStruct((S, HE), source.dtype),
                   jax.ShapeDtypeStruct((S, HE), value.dtype)),
        grid_spec=pltpu.PrefetchScalarGridSpec(
            num_scalar_prefetch=0,
            grid=(pl.cdiv(S, ts),),
            in_specs=[
                pl.BlockSpec((ts, d_llm), lambda i: (i, 0)),   # source rows
                pl.BlockSpec((ts, d_llm), lambda i: (i, 0)),   # value rows
                pl.BlockSpec((d_llm, HE), const2),             # Wk (resident)
                pl.BlockSpec((1, HE), const2),                 # bk
                pl.BlockSpec((d_llm, HE), const2),             # Wv (resident)
                pl.BlockSpec((1, HE), const2),                 # bv
            ],
            out_specs=[out_spec, out_spec],
        ),
        compiler_params=pltpu.CompilerParams(
            dimension_semantics=("parallel",),
        ),
    )(source, value, wk, bk, wv, bv)


# ---------------------------------------------------------------------------
# Kernel 2: fused Q-projection + multi-head attention + output projection
# ---------------------------------------------------------------------------
def _make_fused_kernel(n_heads, d_keys, scale):
    def _fused_kernel(x_ref, k_ref, v_ref, wq_ref, bq_ref, wo_ref, bo_ref,
                      o_ref):
        # Q projection: (tm, d_model) @ (d_model, H*E) -> f32 accumulator.
        q = (jnp.dot(x_ref[...], wq_ref[...],
                     preferred_element_type=jnp.float32)
             + bq_ref[...].astype(jnp.float32))                 # (tm, H*E)

        k = k_ref[...]                                          # (S, H*E)
        v = v_ref[...]                                          # (S, H*E)

        # Output projection fused per head:
        #   y = bo + sum_h (attn_h @ Wo[h*E:(h+1)*E, :])
        # avoids materializing / concatenating the (tm, H*E) intermediate.
        y = jnp.broadcast_to(bo_ref[...].astype(jnp.float32),
                             (o_ref.shape[0], o_ref.shape[1]))
        for h in range(n_heads):
            sl = slice(h * d_keys, (h + 1) * d_keys)
            q_h = q[:, sl].astype(k.dtype)                      # (tm, E)
            k_h = k[:, sl]                                      # (S, E)
            v_h = v[:, sl]                                      # (S, E)

            # scores = q_h @ k_h^T without materializing a transpose.
            s = lax.dot_general(
                q_h, k_h, (((1,), (1,)), ((), ())),
                preferred_element_type=jnp.float32) * scale     # (tm, S)

            # Softmax over S, kept entirely in f32 on the VPU/EUP path.
            m = s.max(axis=-1, keepdims=True)
            p = jnp.exp(s - m)
            a = p * pl.reciprocal(p.sum(axis=-1, keepdims=True), approx=True)
            # TODO(synk): attention_dropout is identity in eval mode; not implemented.

            attn_h = jnp.dot(a.astype(v_h.dtype), v_h,
                             preferred_element_type=jnp.float32)  # (tm, E)
            y = y + jnp.dot(attn_h.astype(wo_ref.dtype), wo_ref[sl, :],
                            preferred_element_type=jnp.float32)   # (tm, d_llm)

        o_ref[...] = y.astype(o_ref.dtype)                       # lane-dense store

    return _fused_kernel


# ---------------------------------------------------------------------------
# ReprogrammingLayer forward
# ---------------------------------------------------------------------------
def reprogramming_layer_forward(params, target_embedding, source_embedding,
                                value_embedding, n_heads):
    B, L, d_model = target_embedding.shape
    S, _ = source_embedding.shape
    HE = params["wq"].shape[1]           # d_keys * n_heads
    E = HE // n_heads
    d_llm = params["wo"].shape[1]

    # K / V projections: computed once, tiny (S, H*E) HBM intermediates.
    k, v = kv_projection(source_embedding, value_embedding,
                         params["wk"], params["bk"],
                         params["wv"], params["bv"])

    # Fused attention over row tiles of the flattened (B*L) dimension.  All
    # batches share K/V, so softmax rows stay independent even when multiple
    # batch elements are packed into one tile (better MXU occupancy).
    BL = B * L
    x = target_embedding.reshape(BL, d_model)
    tm = _pick_row_tile(BL)
    scale = 1.0 / sqrt(E)
    const2 = lambda i: (0, 0)

    out = pl.pallas_call(
        _make_fused_kernel(n_heads, E, scale),
        out_shape=jax.ShapeDtypeStruct((BL, d_llm), target_embedding.dtype),
        grid_spec=pltpu.PrefetchScalarGridSpec(
            num_scalar_prefetch=0,
            grid=(pl.cdiv(BL, tm),),
            in_specs=[
                pl.BlockSpec((tm, d_model), lambda i: (i, 0)),  # x row tile
                pl.BlockSpec((S, HE), const2),                  # K (resident)
                pl.BlockSpec((S, HE), const2),                  # V (resident)
                pl.BlockSpec((d_model, HE), const2),            # Wq
                pl.BlockSpec((1, HE), const2),                  # bq
                pl.BlockSpec((HE, d_llm), const2),              # Wo
                pl.BlockSpec((1, d_llm), const2),               # bo
            ],
            out_specs=pl.BlockSpec((tm, d_llm), lambda i: (i, 0)),
        ),
        compiler_params=pltpu.CompilerParams(
            dimension_semantics=("parallel",),   # row tiles shard across TCs
        ),
    )(x, k, v, params["wq"], params["bq"], params["wo"], params["bo"])

    return out.reshape(B, L, d_llm)


# ---------------------------------------------------------------------------
# Pure-JAX reference for correctness checking
# ---------------------------------------------------------------------------
def reprogramming_layer_ref(params, target_embedding, source_embedding,
                            value_embedding, n_heads):
    B, L, _ = target_embedding.shape
    S, _ = source_embedding.shape
    H = n_heads
    HE = params["wq"].shape[1]
    E = HE // H

    q = target_embedding @ params["wq"] + params["bq"][0]
    k = source_embedding @ params["wk"] + params["bk"][0]
    v = value_embedding @ params["wv"] + params["bv"][0]

    q = q.reshape(B, L, H, E)
    k = k.reshape(S, H, E)
    v = v.reshape(S, H, E)

    scale = 1.0 / sqrt(E)
    scores = jnp.einsum("blhe,she->bhls", q, k)
    a = jax.nn.softmax(scale * scores, axis=-1)
    out = jnp.einsum("bhls,she->blhe", a, v).reshape(B, L, -1)
    return out @ params["wo"] + params["bo"][0]


# ---------------------------------------------------------------------------
if __name__ == "__main__":
    # Small shapes consistent with the module's forward.
    B, L, S = 2, 8, 16
    d_model, n_heads, d_llm = 32, 4, 32
    d_keys = d_model // n_heads           # 8
    dk_h = d_keys * n_heads               # 32

    key = jax.random.PRNGKey(0)
    keys = jax.random.split(key, 12)

    def init_linear(kw, kb, in_dim, out_dim):
        bound = 1.0 / sqrt(in_dim)
        w = jax.random.uniform(kw, (in_dim, out_dim), jnp.float32, -bound, bound)
        b = jax.random.uniform(kb, (1, out_dim), jnp.float32, -bound, bound)
        return w, b

    wq, bq = init_linear(keys[0], keys[1], d_model, dk_h)
    wk, bk = init_linear(keys[2], keys[3], d_llm, dk_h)
    wv, bv = init_linear(keys[4], keys[5], d_llm, dk_h)
    wo, bo = init_linear(keys[6], keys[7], dk_h, d_llm)
    params = dict(wq=wq, bq=bq, wk=wk, bk=bk, wv=wv, bv=bv, wo=wo, bo=bo)

    target_embedding = jax.random.normal(keys[8], (B, L, d_model), jnp.float32)
    source_embedding = jax.random.normal(keys[9], (S, d_llm), jnp.float32)
    value_embedding = jax.random.normal(keys[10], (S, d_llm), jnp.float32)

    out = reprogramming_layer_forward(params, target_embedding, source_embedding,
                                      value_embedding, n_heads)
    out = jax.block_until_ready(out)

    ref = reprogramming_layer_ref(params, target_embedding, source_embedding,
                                  value_embedding, n_heads)
    ref = jax.block_until_ready(ref)

    assert out.shape == (B, L, d_llm), out.shape
    # Tolerance loosened slightly vs. exact-division path because the softmax
    # denominator uses the EUP approximate reciprocal (pl.reciprocal approx=True).
    assert jnp.allclose(out, ref, atol=1e-3, rtol=1e-3), \
        float(jnp.max(jnp.abs(out - ref)))

    print("KERNEL_OK")
</pallas_src>

<mosaic_0001>
module attributes {stable_mosaic.version = 11 : i64} {
  func.func @_kv_proj_kernel(%arg0: i32, %arg1: memref<16x32xf32, #tpu.memory_space<vmem>>, %arg2: memref<16x32xf32, #tpu.memory_space<vmem>>, %arg3: memref<32x32xf32, #tpu.memory_space<vmem>>, %arg4: memref<1x32xf32, #tpu.memory_space<vmem>>, %arg5: memref<32x32xf32, #tpu.memory_space<vmem>>, %arg6: memref<1x32xf32, #tpu.memory_space<vmem>>, %arg7: memref<16x32xf32, #tpu.memory_space<vmem>>, %arg8: memref<16x32xf32, #tpu.memory_space<vmem>>) attributes {dimension_semantics = [#tpu.dimension_semantics<parallel>], iteration_bounds = array<i64: 1>, scalar_prefetch = 0 : i64, scratch_operands = 0 : i64, tpu.core_type = #tpu.core_type<tc>, window_params = [{transform_indices = @transform_0, window_bounds = array<i64: 16, 32>}, {transform_indices = @transform_1, window_bounds = array<i64: 16, 32>}, {pipeline_mode = #tpu.pipeline_mode<synchronous>, transform_indices = @transform_2, window_bounds = array<i64: 32, 32>}, {pipeline_mode = #tpu.pipeline_mode<synchronous>, transform_indices = @transform_3, window_bounds = array<i64: 1, 32>}, {pipeline_mode = #tpu.pipeline_mode<synchronous>, transform_indices = @transform_4, window_bounds = array<i64: 32, 32>}, {pipeline_mode = #tpu.pipeline_mode<synchronous>, transform_indices = @transform_5, window_bounds = array<i64: 1, 32>}, {transform_indices = @transform_6, window_bounds = array<i64: 16, 32>}, {transform_indices = @transform_7, window_bounds = array<i64: 16, 32>}]} {
    %c0 = arith.constant 0 : index
    %c0_0 = arith.constant 0 : index
    %0 = vector.load %arg1[%c0, %c0_0] : memref<16x32xf32, #tpu.memory_space<vmem>>, vector<16x32xf32>
    %c0_1 = arith.constant 0 : index
    %c0_2 = arith.constant 0 : index
    %1 = vector.load %arg3[%c0_1, %c0_2] : memref<32x32xf32, #tpu.memory_space<vmem>>, vector<32x32xf32>
    %cst = arith.constant dense<0.000000e+00> : vector<16x32xf32>
    %2 = tpu.matmul %0, %1, %cst {dimension_numbers = #tpu.dot_dimension_numbers<[1], [0], [0], [1], [0, 0, 1, 1], [], []>} : vector<16x32xf32>, vector<32x32xf32>, vector<16x32xf32> -> vector<16x32xf32>
    %c0_3 = arith.constant 0 : index
    %c0_4 = arith.constant 0 : index
    %3 = vector.load %arg2[%c0_3, %c0_4] : memref<16x32xf32, #tpu.memory_space<vmem>>, vector<16x32xf32>
    %c0_5 = arith.constant 0 : index
    %c0_6 = arith.constant 0 : index
    %4 = vector.load %arg5[%c0_5, %c0_6] : memref<32x32xf32, #tpu.memory_space<vmem>>, vector<32x32xf32>
    %cst_7 = arith.constant dense<0.000000e+00> : vector<16x32xf32>
    %5 = tpu.matmul %3, %4, %cst_7 {dimension_numbers = #tpu.dot_dimension_numbers<[1], [0], [0], [1], [0, 0, 1, 1], [], []>} : vector<16x32xf32>, vector<32x32xf32>, vector<16x32xf32> -> vector<16x32xf32>
    %c0_8 = arith.constant 0 : index
    %c0_9 = arith.constant 0 : index
    %6 = vector.load %arg4[%c0_8, %c0_9] : memref<1x32xf32, #tpu.memory_space<vmem>>, vector<1x32xf32>
    %7 = vector.broadcast %6 : vector<1x32xf32> to vector<16x32xf32>
    %8 = arith.addf %2, %7 : vector<16x32xf32>
    %c0_10 = arith.constant 0 : index
    %c0_11 = arith.constant 0 : index
    %9 = vector.load %arg7[%c0_10, %c0_11] : memref<16x32xf32, #tpu.memory_space<vmem>>, vector<16x32xf32>
    tpu.vector_store %arg7[%c0_10, %c0_11], %8 {strides = array<i32>} : memref<16x32xf32, #tpu.memory_space<vmem>>, vector<16x32xf32>,
    %c0_12 = arith.constant 0 : index
    %c0_13 = arith.constant 0 : index
    %10 = vector.load %arg6[%c0_12, %c0_13] : memref<1x32xf32, #tpu.memory_space<vmem>>, vector<1x32xf32>
    %11 = vector.broadcast %10 : vector<1x32xf32> to vector<16x32xf32>
    %12 = arith.addf %5, %11 : vector<16x32xf32>
    %c0_14 = arith.constant 0 : index
    %c0_15 = arith.constant 0 : index
    %13 = vector.load %arg8[%c0_14, %c0_15] : memref<16x32xf32, #tpu.memory_space<vmem>>, vector<16x32xf32>
    tpu.vector_store %arg8[%c0_14, %c0_15], %12 {strides = array<i32>} : memref<16x32xf32, #tpu.memory_space<vmem>>, vector<16x32xf32>,
    return
  }
  func.func @transform_0(%arg0: i32) -> (i32, i32) {
    %c0_i32 = arith.constant 0 : i32
    %c0_i32_0 = arith.constant 0 : i32
    return %arg0, %c0_i32 : i32, i32
  }
  func.func @transform_1(%arg0: i32) -> (i32, i32) {
    %c0_i32 = arith.constant 0 : i32
    %c0_i32_0 = arith.constant 0 : i32
    return %arg0, %c0_i32 : i32, i32
  }
  func.func @transform_2(%arg0: i32) -> (i32, i32) {
    %c0_i32 = arith.constant 0 : i32
    %c0_i32_0 = arith.constant 0 : i32
    %c0_i32_1 = arith.constant 0 : i32
    return %c0_i32, %c0_i32_0 : i32, i32
  }
  func.func @transform_3(%arg0: i32) -> (i32, i32) {
    %c0_i32 = arith.constant 0 : i32
    %c0_i32_0 = arith.constant 0 : i32
    %c0_i32_1 = arith.constant 0 : i32
    return %c0_i32, %c0_i32_0 : i32, i32
  }
  func.func @transform_4(%arg0: i32) -> (i32, i32) {
    %c0_i32 = arith.constant 0 : i32
    %c0_i32_0 = arith.constant 0 : i32
    %c0_i32_1 = arith.constant 0 : i32
    return %c0_i32, %c0_i32_0 : i32, i32
  }
  func.func @transform_5(%arg0: i32) -> (i32, i32) {
    %c0_i32 = arith.constant 0 : i32
    %c0_i32_0 = arith.constant 0 : i32
    %c0_i32_1 = arith.constant 0 : i32
    return %c0_i32, %c0_i32_0 : i32, i32
  }
  func.func @transform_6(%arg0: i32) -> (i32, i32) {
    %c0_i32 = arith.constant 0 : i32
    %c0_i32_0 = arith.constant 0 : i32
    return %arg0, %c0_i32 : i32, i32
  }
  func.func @transform_7(%arg0: i32) -> (i32, i32) {
    %c0_i32 = arith.constant 0 : i32
    %c0_i32_0 = arith.constant 0 : i32
    return %arg0, %c0_i32 : i32, i32
  }
}

</mosaic_0001>

<llo_original>
// kernel: tpu_custom_call.1
$region0: #{tpu_custom_call.1}
  #allocation0 [shape = 'u32[]', space=smem, size = 0x4, offset = 0x4, fixed_abs, tag = 'smem constant byte address 0x4 - core index']
  #allocation1 [shape = 'u32[144,128]{1,0:T(1,128)}', space=vmem, size = 0x12000, scoped, tag = 'internal scratch']
  %s0 = inlined_call_operand.hbm [shape: f32[16,32], index: 0, kind: input, shape index: {}]
  %s1 = inlined_call_operand.hbm [shape: f32[16,32], index: 1, kind: input, shape index: {}]
  %s2 = inlined_call_operand.hbm [shape: f32[32,32], index: 2, kind: input, shape index: {}]
  %s3 = inlined_call_operand.vmem [shape: f32[1,32], index: 3, kind: input, shape index: {}]
  %s4 = inlined_call_operand.hbm [shape: f32[32,32], index: 4, kind: input, shape index: {}]
  %s5 = inlined_call_operand.vmem [shape: f32[1,32], index: 5, kind: input, shape index: {}]
  %s6 = inlined_call_operand.hbm [shape: f32[16,32], index: 6, kind: output, shape index: {0}]
  %s7 = inlined_call_operand.hbm [shape: f32[16,32], index: 7, kind: output, shape index: {1}]
  %8 = xla_tuple %s6, %s7
  %s9 = sld [smem:[#allocation0]]
  $region58: #{tpu_custom_call.1} parent=0
    _
  %s11 = ssub.s32 1, %s9
  %s12 = scalar_select 0, %s11, %s9
  $region1: #{tpu_custom_call.1} parent=0
    #allocation2 [shape = 'u8[8192]{0}', space=vmem, size = 0x2000, scoped, tag = 'input window, operand 0, single buffered']
    #allocation3 [shape = 's32[1]{0}', space=sflag, size = 0x4, scoped, tag = 'scoped memory for tpu_custom_call.1']
    #allocation4 [shape = 's32[1]{0}', space=sflag, size = 0x4, scoped, tag = 'scoped memory for tpu_custom_call.1']
    #allocation5 [shape = 'u8[8192]{0}', space=vmem, size = 0x2000, scoped, tag = 'input window, operand 1, single buffered']
    #allocation6 [shape = 's32[1]{0}', space=sflag, size = 0x4, scoped, tag = 'scoped memory for tpu_custom_call.1']
    #allocation7 [shape = 'u8[16384]{0}', space=vmem, size = 0x4000, scoped, tag = 'input window, operand 2, single buffered']
    #allocation8 [shape = 'u8[16384]{0}', space=vmem, size = 0x4000, scoped, tag = 'input window, operand 4, single buffered']
    #allocation9 [shape = 's32[1]{0}', space=sflag, size = 0x4, scoped, tag = 'scoped memory for tpu_custom_call.1']
    #allocation10 [shape = 'u8[8192]{0}', space=vmem, size = 0x2000, scoped, tag = 'output window, operand 0, single buffered']
    #allocation11 [shape = 'u8[8192]{0}', space=vmem, size = 0x2000, scoped, tag = 'output window, operand 1, single buffered']
    #allocation12 [shape = 's32[1]{0}', space=sflag, size = 0x4, scoped, tag = 'scoped memory for tpu_custom_call.1']
    %13 = vsyncpa [#allocation3], 0
    %14 = vsyncpa [#allocation6], 0
    %15 = vsyncpa [#allocation9], 0
    %16 = vsyncpa [#allocation4], 0
    %17 = vsyncpa [#allocation12], 0
    // Predicated region
    $region2: #{tpu_custom_call.1} parent=1 // pred_check
      _
    $region3: #{tpu_custom_call.1} parent=1 // pred_check_branch
      %19 = sbr.rel (0) target = $region5
    $region4: #{tpu_custom_call.1} parent=1 // pred_region
      %s21 = ssub.s32 256, 256
      %22 = vsyncadd [#allocation3], %s21
      %s23 = sshll.u32 [#allocation2], 4
      %s24 = int_to_ptr.vmem [resolvable:$true] %s23
      %29 = dma.hbm_to_vmem [thread:$0]  %s0, 256, %s24, [#allocation3], 128, 128, 8
    $region5: #{tpu_custom_call.1} parent=1 // pred_fallthru
      _
    // Predicated region
    $region6: #{tpu_custom_call.1} parent=1 // pred_check
      _
    $region7: #{tpu_custom_call.1} parent=1 // pred_check_branch
      %31 = sbr.rel (0) target = $region9
    $region8: #{tpu_custom_call.1} parent=1 // pred_region
      %s33 = ssub.s32 256, 256
      %34 = vsyncadd [#allocation6], %s33
      %s35 = sshll.u32 [#allocation5], 4
      %s36 = int_to_ptr.vmem [resolvable:$true] %s35
      %41 = dma.hbm_to_vmem [thread:$0]  %s1, 256, %s36, [#allocation6], 128, 128, 8
    $region9: #{tpu_custom_call.1} parent=1 // pred_fallthru
      _
    // Predicated region
    $region10: #{tpu_custom_call.1} parent=1 // pred_check
      _
    $region11: #{tpu_custom_call.1} parent=1 // pred_check_branch
      %43 = sbr.rel (0) target = $region13
    $region12: #{tpu_custom_call.1} parent=1 // pred_region
      %s45 = ssub.s32 512, 512
      %46 = vsyncadd [#allocation6], %s45
      %s47 = sshll.u32 [#allocation7], 4
      %s48 = int_to_ptr.vmem [resolvable:$true] %s47
      %53 = dma.hbm_to_vmem [thread:$0]  %s2, 512, %s48, [#allocation6], 128, 128, 8
    $region13: #{tpu_custom_call.1} parent=1 // pred_fallthru
      _
    // Predicated region
    $region14: #{tpu_custom_call.1} parent=1 // pred_check
      _
    $region15: #{tpu_custom_call.1} parent=1 // pred_check_branch
      %55 = sbr.rel (0) target = $region17
    $region16: #{tpu_custom_call.1} parent=1 // pred_region
      _
    $region17: #{tpu_custom_call.1} parent=1 // pred_fallthru
      _
    // Predicated region
    $region18: #{tpu_custom_call.1} parent=1 // pred_check
      _
    $region19: #{tpu_custom_call.1} parent=1 // pred_check_branch
      %57 = sbr.rel (0) target = $region21
    $region20: #{tpu_custom_call.1} parent=1 // pred_region
      %s59 = ssub.s32 512, 512
      %60 = vsyncadd [#allocation9], %s59
      %s61 = sshll.u32 [#allocation8], 4
      %s62 = int_to_ptr.vmem [resolvable:$true] %s61
      %67 = dma.hbm_to_vmem [thread:$0]  %s4, 512, %s62, [#allocation9], 128, 128, 8
    $region21: #{tpu_custom_call.1} parent=1 // pred_fallthru
      _
    // Predicated region
    $region22: #{tpu_custom_call.1} parent=1 // pred_check
      _
    $region23: #{tpu_custom_call.1} parent=1 // pred_check_branch
      %69 = sbr.rel (0) target = $region25
    $region24: #{tpu_custom_call.1} parent=1 // pred_region
      _
    $region25: #{tpu_custom_call.1} parent=1 // pred_fallthru
      _
    // Predicated region
    $region26: #{tpu_custom_call.1} parent=1 // pred_check
      _
    $region27: #{tpu_custom_call.1} parent=1 // pred_check_branch
      %71 = sbr.rel (0) target = $region29
    $region28: #{tpu_custom_call.1} parent=1 // pred_region
      %72 = dma.done [#allocation3], 256
    $region29: #{tpu_custom_call.1} parent=1 // pred_fallthru
      _
    // Predicated region
    $region30: #{tpu_custom_call.1} parent=1 // pred_check
      _
    $region31: #{tpu_custom_call.1} parent=1 // pred_check_branch
      %74 = sbr.rel (0) target = $region33
    $region32: #{tpu_custom_call.1} parent=1 // pred_region
      %75 = dma.done [#allocation6], 256
    $region33: #{tpu_custom_call.1} parent=1 // pred_fallthru
      _
    // Predicated region
    $region34: #{tpu_custom_call.1} parent=1 // pred_check
      _
    $region35: #{tpu_custom_call.1} parent=1 // pred_check_branch
      %77 = sbr.rel (0) target = $region37
    $region36: #{tpu_custom_call.1} parent=1 // pred_region
      %78 = dma.done [#allocation6], 512
    $region37: #{tpu_custom_call.1} parent=1 // pred_fallthru
      _
    // Predicated region
    $region38: #{tpu_custom_call.1} parent=1 // pred_check
      _
    $region39: #{tpu_custom_call.1} parent=1 // pred_check_branch
      %80 = sbr.rel (0) target = $region41
    $region40: #{tpu_custom_call.1} parent=1 // pred_region
      %81 = dma.done [#allocation9], 512
    $region41: #{tpu_custom_call.1} parent=1 // pred_fallthru
      _
    %v82 = vld [vmem:[#allocation2] sm:$0xff]
    %v83 = vld [vmem:[#allocation2 + $0x8] sm:$0xff]
    %v84 = vld [vmem:[#allocation7] sm:$0xff]
    %v85 = vld [vmem:[#allocation7 + $0x8] sm:$0xff]
    %v86 = vld [vmem:[#allocation7 + $0x10] sm:$0xff]
    %v87 = vld [vmem:[#allocation7 + $0x18] sm:$0xff]
    %v88 = vld [vmem:[#allocation5] sm:$0xff]
    %v89 = vld [vmem:[#allocation5 + $0x8] sm:$0xff]
    %v90 = vld [vmem:[#allocation8] sm:$0xff]
    %v91 = vld [vmem:[#allocation8 + $0x8] sm:$0xff]
    %v92 = vld [vmem:[#allocation8 + $0x10] sm:$0xff]
    %v93 = vld [vmem:[#allocation8 + $0x18] sm:$0xff]
    %v94 = vld [vmem:[%s3] sm:$0x1]
    %v96 = vlaneseq
    %v97 = vshrl.u32 %v96, 7
    %v98 = vsub.s32 0, %v97
    %v99 = vrot.slane %v94, %v98
    %vm101 = vcmask 261120
    %v103 = vsel %vm101, %v82, 0
    %v106 = vsel %vm101, %v83, 0
    %108 = vmatprep.subr.mxu0 0.0
    %109 = vmatpush1.msra.mxu0 %v84
    %110 = vmatprep.subr.mxu0 0.0
    %111 = vmatpush1.msra.mxu0 %v85
    %112 = vmatprep.subr.mxu0 0.0
    %113 = vmatpush1.msra.mxu0 %v86
    %114 = vmatprep.subr.mxu0 0.0
    %115 = vmatpush1.msra.mxu0 %v87
    %116 = vmatprep.subr.mxu0 0.0
    %117 = vmatpush1.msra.mxu0 0.0
    %118 = vmatprep.subr.mxu0 0.0
    %119 = vmatpush1.msra.mxu0 0.0
    %120 = vmatprep.subr.mxu0 0.0
    %121 = vmatpush1.msra.mxu0 0.0
    %122 = vmatprep.subr.mxu0 0.0
    %123 = vmatpush1.msra.mxu0 0.0
    %124 = vmatprep.subr.mxu0 0.0
    %125 = vmatpush1.msra.mxu0 0.0
    %126 = vmatprep.subr.mxu0 0.0
    %127 = vmatpush1.msra.mxu0 0.0
    %128 = vmatprep.subr.mxu0 0.0
    %129 = vmatpush1.msra.mxu0 0.0
    %130 = vmatprep.subr.mxu0 0.0
    %131 = vmatpush1.msra.mxu0 0.0
    %132 = vmatprep.subr.mxu0 0.0
    %133 = vmatpush1.msra.mxu0 0.0
    %134 = vmatprep.subr.mxu0 0.0
    %135 = vmatpush1.msra.mxu0 0.0
    %136 = vmatprep.subr.mxu0 0.0
    %137 = vmatpush1.msra.mxu0 0.0
    %138 = vmatprep.subr.mxu0 0.0
    %139 = vmatpush1.msra.mxu0 0.0
    %140 = vmatprep.subr.mxu0 0.0
    %141 = vmatpush1.msra.mxu0 0.0
    %142 = vmatprep.subr.mxu0 0.0
    %143 = vmatpush1.msra.mxu0 0.0
    %144 = vmatprep.subr.mxu0 0.0
    %145 = vmatpush1.msra.mxu0 0.0
    %146 = vmatprep.subr.mxu0 0.0
    %147 = vmatpush1.msra.mxu0 0.0
    %148 = vmatprep.subr.mxu0 0.0
    %149 = vmatpush1.msra.mxu0 0.0
    %150 = vmatprep.subr.mxu0 0.0
    %151 = vmatpush1.msra.mxu0 0.0
    %152 = vmatprep.subr.mxu0 0.0
    %153 = vmatpush1.msra.mxu0 0.0
    %154 = vmatprep.subr.mxu0 0.0
    %155 = vmatpush1.msra.mxu0 0.0
    %156 = vmatprep.subr.mxu0 0.0
    %157 = vmatpush1.msra.mxu0 0.0
    %158 = vmatprep.subr.mxu0 0.0
    %159 = vmatpush1.msra.mxu0 0.0
    %160 = vmatprep.subr.mxu0 0.0
    %161 = vmatpush1.msra.mxu0 0.0
    %162 = vmatprep.subr.mxu0 0.0
    %163 = vmatpush1.msra.mxu0 0.0
    %164 = vmatprep.subr.mxu0 0.0
    %165 = vmatpush1.msra.mxu0 0.0
    %166 = vmatprep.subr.mxu0 0.0
    %167 = vmatpush1.msra.mxu0 0.0
    %168 = vmatprep.subr.mxu0 0.0
    %169 = vmatpush1.msra.mxu0 0.0
    %170 = vmatprep.subr.mxu0 0.0
    %171 = vmatpush1.msra.mxu0 0.0
    %172 = vmatprep.mubr.f32.mxu0 0.0
    %173 = vmatmul.mubr.f32.gmra.mrb[0].mxu0 %v103
    %v174 = vpop.f32.mrb[0].mxu0
    %v175 = vadd.f32 %v99, %v174
    %v176 = vpop.f32.mrb[0].mxu0
    %177 = vmatprep.mubr.f32.mxu0 0.0
    %178 = vmatmul.mubr.f32.gmra.mrb[0].mxu0 %v106
    %v179 = vpop.f32.mrb[0].mxu0
    %v180 = vadd.f32 %v99, %v179
    %v181 = vpop.f32.mrb[0].mxu0
    %182 = vdwg.mxu0
    %183 = vst.msk [vmem:[#allocation10] sm:$0xff] %vm101, %v175
    %184 = vst.msk [vmem:[#allocation10 + $0x8] sm:$0xff] %vm101, %v180
    %v185 = vld [vmem:[%s5] sm:$0x1]
    %v187 = vlaneseq
    %v188 = vshrl.u32 %v187, 7
    %v189 = vsub.s32 0, %v188
    %v190 = vrot.slane %v185, %v189
    %v193 = vsel %vm101, %v88, 0
    %v196 = vsel %vm101, %v89, 0
    %198 = vmatprep.subr.mxu0 0.0
    %199 = vmatpush1.msra.mxu0 %v90
    %200 = vmatprep.subr.mxu0 0.0
    %201 = vmatpush1.msra.mxu0 %v91
    %202 = vmatprep.subr.mxu0 0.0
    %203 = vmatpush1.msra.mxu0 %v92
    %204 = vmatprep.subr.mxu0 0.0
    %205 = vmatpush1.msra.mxu0 %v93
    %206 = vmatprep.subr.mxu0 0.0
    %207 = vmatpush1.msra.mxu0 0.0
    %208 = vmatprep.subr.mxu0 0.0
    %209 = vmatpush1.msra.mxu0 0.0
    %210 = vmatprep.subr.mxu0 0.0
    %211 = vmatpush1.msra.mxu0 0.0
    %212 = vmatprep.subr.mxu0 0.0
    %213 = vmatpush1.msra.mxu0 0.0
    %214 = vmatprep.subr.mxu0 0.0
    %215 = vmatpush1.msra.mxu0 0.0
    %216 = vmatprep.subr.mxu0 0.0
    %217 = vmatpush1.msra.mxu0 0.0
    %218 = vmatprep.subr.mxu0 0.0
    %219 = vmatpush1.msra.mxu0 0.0
    %220 = vmatprep.subr.mxu0 0.0
    %221 = vmatpush1.msra.mxu0 0.0
    %222 = vmatprep.subr.mxu0 0.0
    %223 = vmatpush1.msra.mxu0 0.0
    %224 = vmatprep.subr.mxu0 0.0
    %225 = vmatpush1.msra.mxu0 0.0
    %226 = vmatprep.subr.mxu0 0.0
    %227 = vmatpush1.msra.mxu0 0.0
    %228 = vmatprep.subr.mxu0 0.0
    %229 = vmatpush1.msra.mxu0 0.0
    %230 = vmatprep.subr.mxu0 0.0
    %231 = vmatpush1.msra.mxu0 0.0
    %232 = vmatprep.subr.mxu0 0.0
    %233 = vmatpush1.msra.mxu0 0.0
    %234 = vmatprep.subr.mxu0 0.0
    %235 = vmatpush1.msra.mxu0 0.0
    %236 = vmatprep.subr.mxu0 0.0
    %237 = vmatpush1.msra.mxu0 0.0
    %238 = vmatprep.subr.mxu0 0.0
    %239 = vmatpush1.msra.mxu0 0.0
    %240 = vmatprep.subr.mxu0 0.0
    %241 = vmatpush1.msra.mxu0 0.0
    %242 = vmatprep.subr.mxu0 0.0
    %243 = vmatpush1.msra.mxu0 0.0
    %244 = vmatprep.subr.mxu0 0.0
    %245 = vmatpush1.msra.mxu0 0.0
    %246 = vmatprep.subr.mxu0 0.0
    %247 = vmatpush1.msra.mxu0 0.0
    %248 = vmatprep.subr.mxu0 0.0
    %249 = vmatpush1.msra.mxu0 0.0
    %250 = vmatprep.subr.mxu0 0.0
    %251 = vmatpush1.msra.mxu0 0.0
    %252 = vmatprep.subr.mxu0 0.0
    %253 = vmatpush1.msra.mxu0 0.0
    %254 = vmatprep.subr.mxu0 0.0
    %255 = vmatpush1.msra.mxu0 0.0
    %256 = vmatprep.subr.mxu0 0.0
    %257 = vmatpush1.msra.mxu0 0.0
    %258 = vmatprep.subr.mxu0 0.0
    %259 = vmatpush1.msra.mxu0 0.0
    %260 = vmatprep.subr.mxu0 0.0
    %261 = vmatpush1.msra.mxu0 0.0
    %262 = vmatprep.mubr.f32.mxu0 0.0
    %263 = vmatmul.mubr.f32.gmra.mrb[0].mxu0 %v193
    %v264 = vpop.f32.mrb[0].mxu0
    %v265 = vadd.f32 %v190, %v264
    %v266 = vpop.f32.mrb[0].mxu0
    %267 = vmatprep.mubr.f32.mxu0 0.0
    %268 = vmatmul.mubr.f32.gmra.mrb[0].mxu0 %v196
    %v269 = vpop.f32.mrb[0].mxu0
    %v270 = vadd.f32 %v190, %v269
    %v271 = vpop.f32.mrb[0].mxu0
    %272 = vdwg.mxu0
    %273 = vst.msk [vmem:[#allocation11] sm:$0xff] %vm101, %v265
    %274 = vst.msk [vmem:[#allocation11 + $0x8] sm:$0xff] %vm101, %v270
    // Predicated region
    $region42: #{tpu_custom_call.1} parent=1 // pred_check
      _
    $region43: #{tpu_custom_call.1} parent=1 // pred_check_branch
      %276 = sbr.rel (0) target = $region45
    $region44: #{tpu_custom_call.1} parent=1 // pred_region
      %s278 = ssub.s32 256, 256
      %279 = vsyncadd [#allocation4], %s278
      %s280 = sshll.u32 [#allocation10], 4
      %s281 = int_to_ptr.vmem [resolvable:$true] %s280
      %286 = dma.vmem_to_hbm [thread:$0]  %s281, 256, %s6, [#allocation4], 128, 128, 8
    $region45: #{tpu_custom_call.1} parent=1 // pred_fallthru
      _
    // Predicated region
    $region46: #{tpu_custom_call.1} parent=1 // pred_check
      _
    $region47: #{tpu_custom_call.1} parent=1 // pred_check_branch
      %288 = sbr.rel (0) target = $region49
    $region48: #{tpu_custom_call.1} parent=1 // pred_region
      %s290 = ssub.s32 256, 256
      %291 = vsyncadd [#allocation12], %s290
      %s292 = sshll.u32 [#allocation11], 4
      %s293 = int_to_ptr.vmem [resolvable:$true] %s292
      %298 = dma.vmem_to_hbm [thread:$0]  %s293, 256, %s7, [#allocation12], 128, 128, 8
    $region49: #{tpu_custom_call.1} parent=1 // pred_fallthru
      _
    // Predicated region
    $region50: #{tpu_custom_call.1} parent=1 // pred_check
      _
    $region51: #{tpu_custom_call.1} parent=1 // pred_check_branch
      %300 = sbr.rel (0) target = $region53
    $region52: #{tpu_custom_call.1} parent=1 // pred_region
      %301 = dma.done [#allocation4], 256
    $region53: #{tpu_custom_call.1} parent=1 // pred_fallthru
      _
    // Predicated region
    $region54: #{tpu_custom_call.1} parent=1 // pred_check
      _
    $region55: #{tpu_custom_call.1} parent=1 // pred_check_branch
      %303 = sbr.rel (0) target = $region57
    $region56: #{tpu_custom_call.1} parent=1 // pred_region
      %304 = dma.done [#allocation12], 256
    $region57: #{tpu_custom_call.1} parent=1 // pred_fallthru
      _
    %305 = vsyncpa [#allocation3], 1
    %306 = vsyncpa [#allocation6], 1
    %307 = vsyncpa [#allocation9], 1
    %308 = vsyncpa [#allocation4], 1
    %309 = vsyncpa [#allocation12], 1

</llo_original>
